<compile_context>
chip_gen: v5e
topology: v5e:2x2
jax: 0.10.0
libtpu: 0.0.40
codegen_flags: <defaults>
</compile_context>

<pallas_src>
import jax
import jax.numpy as jnp
from jax.experimental import pallas as pl
from jax.experimental.pallas import tpu as pltpu

C = 3  # fixed by the module (Conv2d(3, 3, 1))


def _fused_kernel(p_ref, x_ref, o_ref):
    """p_ref: (36,) f32 scalar-prefetch SMEM, packed as
         [w1(9), b1(3), w23(9), b23(3), w4(9), b4(3)].
       x_ref / o_ref: (C, TILE_ROWS, 128) f32 VMEM (batch dim squeezed),
       each channel a dense (8,128)-tiled plane."""

    # Hoist all 36 scalar reads / broadcasts out of the FMA chain.
    def mat(off):
        return [[p_ref[off + 3 * c + k] for k in range(3)] for c in range(3)]

    def vec(off):
        return [p_ref[off + c] for c in range(3)]

    w1, b1 = mat(0), vec(9)
    w23, b23 = mat(12), vec(21)
    w4, b4 = mat(24), vec(33)

    h = [x_ref[c] for c in range(3)]          # three dense (TILE_ROWS, 128) planes

    def layer(h, w, b):
        # out[c] = sum_k w[c][k] * h[k] + b[c]  -> 9 broadcast-scalar VPU FMAs
        return [w[c][0] * h[0] + w[c][1] * h[1] + w[c][2] * h[2] + b[c]
                for c in range(3)]

    h = [jnp.clip(v, 0.0, 6.0) for v in layer(h, w1, b1)]     # conv1 + ReLU6
    h = [jnp.clip(v, 0.0, 6.0) for v in layer(h, w23, b23)]   # (conv2∘conv3) + ReLU6
    h = [jnp.maximum(v, 0.0) for v in layer(h, w4, b4)]       # conv4 + ReLU (relu∘relu)

    for c in range(3):
        o_ref[c] = h[c]                       # three unmasked dense stores


def _pick_tile_rows(rows, n_images, max_rows=4096, target_steps=4):
    """rows = number of 128-pixel lane-rows per image.  Tile is a multiple of 8
    (or == rows when rows <= 8), capped at 4096 rows (6 MiB/block), and halved
    until the grid has >= target_steps blocks so v7x's two TensorCores share work."""
    if rows <= 8:
        return rows                            # block dim == full dim is legal
    tile = min(max_rows, rows)
    tile -= tile % 8
    tile = max(tile, 8)
    while tile >= 16 and n_images * (-(-rows // tile)) < target_steps:
        tile //= 2
        tile -= tile % 8
    return max(tile, 8)


def relu_bound_to_pot_net(x_nchw, params):
    """x_nchw: (N, 3, H, W) float32.  params: dict of w1..w4 (3,3), b1..b4 (3,)."""
    N, c, H, W = x_nchw.shape
    assert c == C
    HW = H * W

    rows = -(-HW // 128)                       # lane-rows per image
    tile_rows = _pick_tile_rows(rows, N)
    rows_pad = -(-rows // tile_rows) * tile_rows
    hw_pad = rows_pad * 128

    x_flat = x_nchw.reshape(N, C, HW)          # free reshape, no transpose
    if hw_pad != HW:
        x_flat = jnp.pad(x_flat, ((0, 0), (0, 0), (0, hw_pad - HW)))
    x4 = x_flat.reshape(N, C, rows_pad, 128)   # dense (8,128)-friendly layout

    # Fold conv2 (Identity activation) into conv3:
    #   w3(w2 h + b2) + b3 == (w3 @ w2) h + (w3 @ b2 + b3)
    w23 = params["w3"] @ params["w2"]
    b23 = params["w3"] @ params["b2"] + params["b3"]
    packed = jnp.concatenate([
        params["w1"].reshape(-1), params["b1"],
        w23.reshape(-1), b23,
        params["w4"].reshape(-1), params["b4"],
    ]).astype(jnp.float32)                     # (36,) scalars -> SMEM prefetch

    # VMEM budget: in + out, double-buffered, + headroom.  Max (tile=4096) is 36 MiB.
    tile_bytes = C * tile_rows * 128 * 4
    vmem_limit = max(6 * tile_bytes, 8 * 1024 * 1024)

    out4 = pl.pallas_call(
        _fused_kernel,
        out_shape=jax.ShapeDtypeStruct((N, C, rows_pad, 128), jnp.float32),
        grid_spec=pltpu.PrefetchScalarGridSpec(
            num_scalar_prefetch=1,
            grid=(N, rows_pad // tile_rows),
            in_specs=[pl.BlockSpec((None, C, tile_rows, 128),
                                   lambda n, t, p: (n, 0, t, 0))],
            out_specs=pl.BlockSpec((None, C, tile_rows, 128),
                                   lambda n, t, p: (n, 0, t, 0)),
        ),
        compiler_params=pltpu.CompilerParams(
            dimension_semantics=("parallel", "parallel"),
            vmem_limit_bytes=vmem_limit,
        ),
    )(packed, x4)

    return out4.reshape(N, C, hw_pad)[:, :, :HW].reshape(N, C, H, W)


def _init_params(key):
    # Deterministic init mimicking PyTorch Conv2d default:
    # U(-1/sqrt(fan_in), 1/sqrt(fan_in)) with fan_in = Cin * 1 * 1 = 3.
    bound = 1.0 / jnp.sqrt(3.0)
    params = {}
    for i in range(1, 5):
        key, kw, kb = jax.random.split(key, 3)
        params[f"w{i}"] = jax.random.uniform(
            kw, (C, C), jnp.float32, minval=-bound, maxval=bound)
        params[f"b{i}"] = jax.random.uniform(
            kb, (C,), jnp.float32, minval=-bound, maxval=bound)
    return params


def _reference(x_nchw, p):
    # Pure-JAX reference of the unfused forward pass (1x1 conv == channel matmul).
    N, c, H, W = x_nchw.shape
    x = jnp.transpose(x_nchw, (0, 2, 3, 1)).reshape(-1, c)
    h = jnp.clip(x @ p["w1"].T + p["b1"], 0.0, 6.0)
    h = h @ p["w2"].T + p["b2"]
    h = jnp.clip(h @ p["w3"].T + p["b3"], 0.0, 6.0)
    h = jnp.maximum(h @ p["w4"].T + p["b4"], 0.0)
    return jnp.transpose(h.reshape(N, H, W, c), (0, 3, 1, 2))


if __name__ == "__main__":
    key = jax.random.PRNGKey(0)
    key, kx1, kx2 = jax.random.split(key, 3)
    params = _init_params(key)

    # Main test shape: N=2, C=3 (fixed by the module), H=W=16  -> H*W = 256.
    x = jax.random.normal(kx1, (2, 3, 16, 16), jnp.float32)
    out = jax.block_until_ready(relu_bound_to_pot_net(x, params))
    ref = _reference(x, params)
    assert out.shape == (2, 3, 16, 16)
    assert jnp.allclose(out, ref, atol=1e-5, rtol=1e-5), "mismatch vs reference"

    # Secondary test: H*W not a multiple of 128 exercises the padded-tail path.
    x2 = jax.random.normal(kx2, (2, 3, 7, 9), jnp.float32)
    out2 = jax.block_until_ready(relu_bound_to_pot_net(x2, params))
    ref2 = _reference(x2, params)
    assert out2.shape == (2, 3, 7, 9)
    assert jnp.allclose(out2, ref2, atol=1e-5, rtol=1e-5), "mismatch vs reference (padded)"

    print("KERNEL_OK")
</pallas_src>

<mosaic_0001>
module attributes {stable_mosaic.version = 11 : i64} {
  func.func @_fused_kernel(%arg0: i32, %arg1: i32, %arg2: memref<36xf32, #tpu.memory_space<smem>>, %arg3: memref<1x3x2x128xf32, #tpu.memory_space<vmem>>, %arg4: memref<1x3x2x128xf32, #tpu.memory_space<vmem>>) attributes {dimension_semantics = [#tpu.dimension_semantics<parallel>, #tpu.dimension_semantics<parallel>], iteration_bounds = array<i64: 2, 1>, scalar_prefetch = 1 : i64, scratch_operands = 0 : i64, tpu.core_type = #tpu.core_type<tc>, window_params = [{transform_indices = @transform_0, window_bounds = array<i64: 1, 3, 2, 128>}, {transform_indices = @transform_1, window_bounds = array<i64: 1, 3, 2, 128>}]} {
    %c0 = arith.constant 0 : index
    %0 = memref.load %arg2[%c0] : memref<36xf32, #tpu.memory_space<smem>>
    %c1 = arith.constant 1 : index
    %1 = memref.load %arg2[%c1] : memref<36xf32, #tpu.memory_space<smem>>
    %c2 = arith.constant 2 : index
    %2 = memref.load %arg2[%c2] : memref<36xf32, #tpu.memory_space<smem>>
    %c3 = arith.constant 3 : index
    %3 = memref.load %arg2[%c3] : memref<36xf32, #tpu.memory_space<smem>>
    %c4 = arith.constant 4 : index
    %4 = memref.load %arg2[%c4] : memref<36xf32, #tpu.memory_space<smem>>
    %c5 = arith.constant 5 : index
    %5 = memref.load %arg2[%c5] : memref<36xf32, #tpu.memory_space<smem>>
    %c6 = arith.constant 6 : index
    %6 = memref.load %arg2[%c6] : memref<36xf32, #tpu.memory_space<smem>>
    %c7 = arith.constant 7 : index
    %7 = memref.load %arg2[%c7] : memref<36xf32, #tpu.memory_space<smem>>
    %c8 = arith.constant 8 : index
    %8 = memref.load %arg2[%c8] : memref<36xf32, #tpu.memory_space<smem>>
    %c9 = arith.constant 9 : index
    %9 = memref.load %arg2[%c9] : memref<36xf32, #tpu.memory_space<smem>>
    %c10 = arith.constant 10 : index
    %10 = memref.load %arg2[%c10] : memref<36xf32, #tpu.memory_space<smem>>
    %c11 = arith.constant 11 : index
    %11 = memref.load %arg2[%c11] : memref<36xf32, #tpu.memory_space<smem>>
    %c12 = arith.constant 12 : index
    %12 = memref.load %arg2[%c12] : memref<36xf32, #tpu.memory_space<smem>>
    %c13 = arith.constant 13 : index
    %13 = memref.load %arg2[%c13] : memref<36xf32, #tpu.memory_space<smem>>
    %c14 = arith.constant 14 : index
    %14 = memref.load %arg2[%c14] : memref<36xf32, #tpu.memory_space<smem>>
    %c15 = arith.constant 15 : index
    %15 = memref.load %arg2[%c15] : memref<36xf32, #tpu.memory_space<smem>>
    %c16 = arith.constant 16 : index
    %16 = memref.load %arg2[%c16] : memref<36xf32, #tpu.memory_space<smem>>
    %c17 = arith.constant 17 : index
    %17 = memref.load %arg2[%c17] : memref<36xf32, #tpu.memory_space<smem>>
    %c18 = arith.constant 18 : index
    %18 = memref.load %arg2[%c18] : memref<36xf32, #tpu.memory_space<smem>>
    %c19 = arith.constant 19 : index
    %19 = memref.load %arg2[%c19] : memref<36xf32, #tpu.memory_space<smem>>
    %c20 = arith.constant 20 : index
    %20 = memref.load %arg2[%c20] : memref<36xf32, #tpu.memory_space<smem>>
    %c21 = arith.constant 21 : index
    %21 = memref.load %arg2[%c21] : memref<36xf32, #tpu.memory_space<smem>>
    %c22 = arith.constant 22 : index
    %22 = memref.load %arg2[%c22] : memref<36xf32, #tpu.memory_space<smem>>
    %c23 = arith.constant 23 : index
    %23 = memref.load %arg2[%c23] : memref<36xf32, #tpu.memory_space<smem>>
    %c24 = arith.constant 24 : index
    %24 = memref.load %arg2[%c24] : memref<36xf32, #tpu.memory_space<smem>>
    %c25 = arith.constant 25 : index
    %25 = memref.load %arg2[%c25] : memref<36xf32, #tpu.memory_space<smem>>
    %c26 = arith.constant 26 : index
    %26 = memref.load %arg2[%c26] : memref<36xf32, #tpu.memory_space<smem>>
    %c27 = arith.constant 27 : index
    %27 = memref.load %arg2[%c27] : memref<36xf32, #tpu.memory_space<smem>>
    %c28 = arith.constant 28 : index
    %28 = memref.load %arg2[%c28] : memref<36xf32, #tpu.memory_space<smem>>
    %c29 = arith.constant 29 : index
    %29 = memref.load %arg2[%c29] : memref<36xf32, #tpu.memory_space<smem>>
    %c30 = arith.constant 30 : index
    %30 = memref.load %arg2[%c30] : memref<36xf32, #tpu.memory_space<smem>>
    %c31 = arith.constant 31 : index
    %31 = memref.load %arg2[%c31] : memref<36xf32, #tpu.memory_space<smem>>
    %c32 = arith.constant 32 : index
    %32 = memref.load %arg2[%c32] : memref<36xf32, #tpu.memory_space<smem>>
    %c33 = arith.constant 33 : index
    %33 = memref.load %arg2[%c33] : memref<36xf32, #tpu.memory_space<smem>>
    %c34 = arith.constant 34 : index
    %34 = memref.load %arg2[%c34] : memref<36xf32, #tpu.memory_space<smem>>
    %c35 = arith.constant 35 : index
    %35 = memref.load %arg2[%c35] : memref<36xf32, #tpu.memory_space<smem>>
    %c0_0 = arith.constant 0 : index
    %c0_1 = arith.constant 0 : index
    %c0_2 = arith.constant 0 : index
    %c0_3 = arith.constant 0 : index
    %36 = vector.load %arg3[%c0_0, %c0_1, %c0_2, %c0_3] : memref<1x3x2x128xf32, #tpu.memory_space<vmem>>, vector<1x1x2x128xf32>
    %37 = vector.shape_cast %36 : vector<1x1x2x128xf32> to vector<2x128xf32>
    %c0_4 = arith.constant 0 : index
    %c1_5 = arith.constant 1 : index
    %c0_6 = arith.constant 0 : index
    %c0_7 = arith.constant 0 : index
    %38 = vector.load %arg3[%c0_4, %c1_5, %c0_6, %c0_7] : memref<1x3x2x128xf32, #tpu.memory_space<vmem>>, vector<1x1x2x128xf32>
    %39 = vector.shape_cast %38 : vector<1x1x2x128xf32> to vector<2x128xf32>
    %c0_8 = arith.constant 0 : index
    %c2_9 = arith.constant 2 : index
    %c0_10 = arith.constant 0 : index
    %c0_11 = arith.constant 0 : index
    %40 = vector.load %arg3[%c0_8, %c2_9, %c0_10, %c0_11] : memref<1x3x2x128xf32, #tpu.memory_space<vmem>>, vector<1x1x2x128xf32>
    %41 = vector.shape_cast %40 : vector<1x1x2x128xf32> to vector<2x128xf32>
    %42 = vector.broadcast %0 : f32 to vector<2x128xf32>
    %43 = arith.mulf %42, %37 : vector<2x128xf32>
    %44 = vector.broadcast %1 : f32 to vector<2x128xf32>
    %45 = arith.mulf %44, %39 : vector<2x128xf32>
    %46 = arith.addf %43, %45 : vector<2x128xf32>
    %47 = vector.broadcast %2 : f32 to vector<2x128xf32>
    %48 = arith.mulf %47, %41 : vector<2x128xf32>
    %49 = arith.addf %46, %48 : vector<2x128xf32>
    %50 = vector.broadcast %9 : f32 to vector<2x128xf32>
    %51 = arith.addf %49, %50 : vector<2x128xf32>
    %52 = vector.broadcast %3 : f32 to vector<2x128xf32>
    %53 = arith.mulf %52, %37 : vector<2x128xf32>
    %54 = vector.broadcast %4 : f32 to vector<2x128xf32>
    %55 = arith.mulf %54, %39 : vector<2x128xf32>
    %56 = arith.addf %53, %55 : vector<2x128xf32>
    %57 = vector.broadcast %5 : f32 to vector<2x128xf32>
    %58 = arith.mulf %57, %41 : vector<2x128xf32>
    %59 = arith.addf %56, %58 : vector<2x128xf32>
    %60 = vector.broadcast %10 : f32 to vector<2x128xf32>
    %61 = arith.addf %59, %60 : vector<2x128xf32>
    %62 = vector.broadcast %6 : f32 to vector<2x128xf32>
    %63 = arith.mulf %62, %37 : vector<2x128xf32>
    %64 = vector.broadcast %7 : f32 to vector<2x128xf32>
    %65 = arith.mulf %64, %39 : vector<2x128xf32>
    %66 = arith.addf %63, %65 : vector<2x128xf32>
    %67 = vector.broadcast %8 : f32 to vector<2x128xf32>
    %68 = arith.mulf %67, %41 : vector<2x128xf32>
    %69 = arith.addf %66, %68 : vector<2x128xf32>
    %70 = vector.broadcast %11 : f32 to vector<2x128xf32>
    %71 = arith.addf %69, %70 : vector<2x128xf32>
    %cst = arith.constant 0.000000e+00 : f32
    %cst_12 = arith.constant 6.000000e+00 : f32
    %72 = vector.broadcast %cst : f32 to vector<2x128xf32>
    %73 = arith.maximumf %72, %51 : vector<2x128xf32>
    %74 = vector.broadcast %cst_12 : f32 to vector<2x128xf32>
    %75 = arith.minimumf %74, %73 : vector<2x128xf32>
    %cst_13 = arith.constant 0.000000e+00 : f32
    %cst_14 = arith.constant 6.000000e+00 : f32
    %76 = vector.broadcast %cst_13 : f32 to vector<2x128xf32>
    %77 = arith.maximumf %76, %61 : vector<2x128xf32>
    %78 = vector.broadcast %cst_14 : f32 to vector<2x128xf32>
    %79 = arith.minimumf %78, %77 : vector<2x128xf32>
    %cst_15 = arith.constant 0.000000e+00 : f32
    %cst_16 = arith.constant 6.000000e+00 : f32
    %80 = vector.broadcast %cst_15 : f32 to vector<2x128xf32>
    %81 = arith.maximumf %80, %71 : vector<2x128xf32>
    %82 = vector.broadcast %cst_16 : f32 to vector<2x128xf32>
    %83 = arith.minimumf %82, %81 : vector<2x128xf32>
    %84 = vector.broadcast %12 : f32 to vector<2x128xf32>
    %85 = arith.mulf %84, %75 : vector<2x128xf32>
    %86 = vector.broadcast %13 : f32 to vector<2x128xf32>
    %87 = arith.mulf %86, %79 : vector<2x128xf32>
    %88 = arith.addf %85, %87 : vector<2x128xf32>
    %89 = vector.broadcast %14 : f32 to vector<2x128xf32>
    %90 = arith.mulf %89, %83 : vector<2x128xf32>
    %91 = arith.addf %88, %90 : vector<2x128xf32>
    %92 = vector.broadcast %21 : f32 to vector<2x128xf32>
    %93 = arith.addf %91, %92 : vector<2x128xf32>
    %94 = vector.broadcast %15 : f32 to vector<2x128xf32>
    %95 = arith.mulf %94, %75 : vector<2x128xf32>
    %96 = vector.broadcast %16 : f32 to vector<2x128xf32>
    %97 = arith.mulf %96, %79 : vector<2x128xf32>
    %98 = arith.addf %95, %97 : vector<2x128xf32>
    %99 = vector.broadcast %17 : f32 to vector<2x128xf32>
    %100 = arith.mulf %99, %83 : vector<2x128xf32>
    %101 = arith.addf %98, %100 : vector<2x128xf32>
    %102 = vector.broadcast %22 : f32 to vector<2x128xf32>
    %103 = arith.addf %101, %102 : vector<2x128xf32>
    %104 = vector.broadcast %18 : f32 to vector<2x128xf32>
    %105 = arith.mulf %104, %75 : vector<2x128xf32>
    %106 = vector.broadcast %19 : f32 to vector<2x128xf32>
    %107 = arith.mulf %106, %79 : vector<2x128xf32>
    %108 = arith.addf %105, %107 : vector<2x128xf32>
    %109 = vector.broadcast %20 : f32 to vector<2x128xf32>
    %110 = arith.mulf %109, %83 : vector<2x128xf32>
    %111 = arith.addf %108, %110 : vector<2x128xf32>
    %112 = vector.broadcast %23 : f32 to vector<2x128xf32>
    %113 = arith.addf %111, %112 : vector<2x128xf32>
    %cst_17 = arith.constant 0.000000e+00 : f32
    %cst_18 = arith.constant 6.000000e+00 : f32
    %114 = vector.broadcast %cst_17 : f32 to vector<2x128xf32>
    %115 = arith.maximumf %114, %93 : vector<2x128xf32>
    %116 = vector.broadcast %cst_18 : f32 to vector<2x128xf32>
    %117 = arith.minimumf %116, %115 : vector<2x128xf32>
    %cst_19 = arith.constant 0.000000e+00 : f32
    %cst_20 = arith.constant 6.000000e+00 : f32
    %118 = vector.broadcast %cst_19 : f32 to vector<2x128xf32>
    %119 = arith.maximumf %118, %103 : vector<2x128xf32>
    %120 = vector.broadcast %cst_20 : f32 to vector<2x128xf32>
    %121 = arith.minimumf %120, %119 : vector<2x128xf32>
    %cst_21 = arith.constant 0.000000e+00 : f32
    %cst_22 = arith.constant 6.000000e+00 : f32
    %122 = vector.broadcast %cst_21 : f32 to vector<2x128xf32>
    %123 = arith.maximumf %122, %113 : vector<2x128xf32>
    %124 = vector.broadcast %cst_22 : f32 to vector<2x128xf32>
    %125 = arith.minimumf %124, %123 : vector<2x128xf32>
    %126 = vector.broadcast %24 : f32 to vector<2x128xf32>
    %127 = arith.mulf %126, %117 : vector<2x128xf32>
    %128 = vector.broadcast %25 : f32 to vector<2x128xf32>
    %129 = arith.mulf %128, %121 : vector<2x128xf32>
    %130 = arith.addf %127, %129 : vector<2x128xf32>
    %131 = vector.broadcast %26 : f32 to vector<2x128xf32>
    %132 = arith.mulf %131, %125 : vector<2x128xf32>
    %133 = arith.addf %130, %132 : vector<2x128xf32>
    %134 = vector.broadcast %33 : f32 to vector<2x128xf32>
    %135 = arith.addf %133, %134 : vector<2x128xf32>
    %136 = vector.broadcast %27 : f32 to vector<2x128xf32>
    %137 = arith.mulf %136, %117 : vector<2x128xf32>
    %138 = vector.broadcast %28 : f32 to vector<2x128xf32>
    %139 = arith.mulf %138, %121 : vector<2x128xf32>
    %140 = arith.addf %137, %139 : vector<2x128xf32>
    %141 = vector.broadcast %29 : f32 to vector<2x128xf32>
    %142 = arith.mulf %141, %125 : vector<2x128xf32>
    %143 = arith.addf %140, %142 : vector<2x128xf32>
    %144 = vector.broadcast %34 : f32 to vector<2x128xf32>
    %145 = arith.addf %143, %144 : vector<2x128xf32>
    %146 = vector.broadcast %30 : f32 to vector<2x128xf32>
    %147 = arith.mulf %146, %117 : vector<2x128xf32>
    %148 = vector.broadcast %31 : f32 to vector<2x128xf32>
    %149 = arith.mulf %148, %121 : vector<2x128xf32>
    %150 = arith.addf %147, %149 : vector<2x128xf32>
    %151 = vector.broadcast %32 : f32 to vector<2x128xf32>
    %152 = arith.mulf %151, %125 : vector<2x128xf32>
    %153 = arith.addf %150, %152 : vector<2x128xf32>
    %154 = vector.broadcast %35 : f32 to vector<2x128xf32>
    %155 = arith.addf %153, %154 : vector<2x128xf32>
    %cst_23 = arith.constant 0.000000e+00 : f32
    %156 = vector.broadcast %cst_23 : f32 to vector<2x128xf32>
    %157 = arith.maximumf %135, %156 : vector<2x128xf32>
    %cst_24 = arith.constant 0.000000e+00 : f32
    %158 = vector.broadcast %cst_24 : f32 to vector<2x128xf32>
    %159 = arith.maximumf %145, %158 : vector<2x128xf32>
    %cst_25 = arith.constant 0.000000e+00 : f32
    %160 = vector.broadcast %cst_25 : f32 to vector<2x128xf32>
    %161 = arith.maximumf %155, %160 : vector<2x128xf32>
    %c0_26 = arith.constant 0 : index
    %c0_27 = arith.constant 0 : index
    %c0_28 = arith.constant 0 : index
    %c0_29 = arith.constant 0 : index
    %162 = vector.load %arg4[%c0_26, %c0_27, %c0_28, %c0_29] : memref<1x3x2x128xf32, #tpu.memory_space<vmem>>, vector<1x1x2x128xf32>
    %163 = vector.shape_cast %162 : vector<1x1x2x128xf32> to vector<2x128xf32>
    %164 = vector.shape_cast %157 : vector<2x128xf32> to vector<1x1x2x128xf32>
    tpu.vector_store %arg4[%c0_26, %c0_27, %c0_28, %c0_29], %164 {strides = array<i32>} : memref<1x3x2x128xf32, #tpu.memory_space<vmem>>, vector<1x1x2x128xf32>,
    %c0_30 = arith.constant 0 : index
    %c1_31 = arith.constant 1 : index
    %c0_32 = arith.constant 0 : index
    %c0_33 = arith.constant 0 : index
    %165 = vector.load %arg4[%c0_30, %c1_31, %c0_32, %c0_33] : memref<1x3x2x128xf32, #tpu.memory_space<vmem>>, vector<1x1x2x128xf32>
    %166 = vector.shape_cast %165 : vector<1x1x2x128xf32> to vector<2x128xf32>
    %167 = vector.shape_cast %159 : vector<2x128xf32> to vector<1x1x2x128xf32>
    tpu.vector_store %arg4[%c0_30, %c1_31, %c0_32, %c0_33], %167 {strides = array<i32>} : memref<1x3x2x128xf32, #tpu.memory_space<vmem>>, vector<1x1x2x128xf32>,
    %c0_34 = arith.constant 0 : index
    %c2_35 = arith.constant 2 : index
    %c0_36 = arith.constant 0 : index
    %c0_37 = arith.constant 0 : index
    %168 = vector.load %arg4[%c0_34, %c2_35, %c0_36, %c0_37] : memref<1x3x2x128xf32, #tpu.memory_space<vmem>>, vector<1x1x2x128xf32>
    %169 = vector.shape_cast %168 : vector<1x1x2x128xf32> to vector<2x128xf32>
    %170 = vector.shape_cast %161 : vector<2x128xf32> to vector<1x1x2x128xf32>
    tpu.vector_store %arg4[%c0_34, %c2_35, %c0_36, %c0_37], %170 {strides = array<i32>} : memref<1x3x2x128xf32, #tpu.memory_space<vmem>>, vector<1x1x2x128xf32>,
    return
  }
  func.func @transform_0(%arg0: i32, %arg1: i32, %arg2: memref<36xf32, #tpu.memory_space<smem>>) -> (i32, i32, i32, i32) {
    %c0_i32 = arith.constant 0 : i32
    %c0_i32_0 = arith.constant 0 : i32
    %c0_i32_1 = arith.constant 0 : i32
    return %arg0, %c0_i32, %arg1, %c0_i32_0 : i32, i32, i32, i32
  }
  func.func @transform_1(%arg0: i32, %arg1: i32, %arg2: memref<36xf32, #tpu.memory_space<smem>>) -> (i32, i32, i32, i32) {
    %c0_i32 = arith.constant 0 : i32
    %c0_i32_0 = arith.constant 0 : i32
    %c0_i32_1 = arith.constant 0 : i32
    return %arg0, %c0_i32, %arg1, %c0_i32_0 : i32, i32, i32, i32
  }
}

</mosaic_0001>

<llo_original>
// kernel: tpu_custom_call.1
$region0: #{tpu_custom_call.1}
  #allocation0 [shape = 'u32[]', space=smem, size = 0x4, offset = 0x4, fixed_abs, tag = 'smem constant byte address 0x4 - core index']
  #allocation1 [shape = 'u32[72,128]{1,0:T(1,128)}', space=vmem, size = 0x9000, scoped, tag = 'internal scratch']
  #allocation2 [shape = 's32[1]{0}', space=sflag, size = 0x4, scoped, tag = 'scoped memory for tpu_custom_call.1']
  #allocation3 [shape = 'u8[512]{0}', space=smem, size = 0x200, scoped, tag = 'prefetched SMEM operand 0']
  %s0 = inlined_call_operand.hbm [shape: f32[36], index: 0, kind: input, shape index: {}]
  %s1 = inlined_call_operand.hbm [shape: f32[2,3,2,128], index: 1, kind: input, shape index: {}]
  %s2 = inlined_call_operand.hbm [shape: f32[2,3,2,128], index: 2, kind: output, shape index: {}]
  %s3 = sld [smem:[#allocation0]]
  $region41: #{tpu_custom_call.1} parent=0
    _
  %s5 = ssub.s32 1, %s3
  %s6 = scalar_select 0, %s5, %s3
  %s8 = sshll.u32 %s0, 4
  %s9 = int_to_ptr.hbm [resolvable:$true] %s8
  %11 = dma.hbm_to_smem %s9, 16, [#allocation3], [#allocation2]
  %13 = dma.done [#allocation2], 16
  %14 = sfence
  $region1: #{tpu_custom_call.1} parent=0
    #allocation4 [shape = 'u8[6144]{0}', space=vmem, size = 0x1800, scoped, tag = 'input window, operand 1']
    #allocation5 [shape = 's32[2]{0}', space=sflag, size = 0x8, scoped, tag = 'scoped memory for tpu_custom_call.1']
    #allocation6 [shape = 's32[2]{0}', space=sflag, size = 0x8, scoped, tag = 'scoped memory for tpu_custom_call.1']
    #allocation7 [shape = 'u8[6144]{0}', space=vmem, size = 0x1800, scoped, tag = 'output window, operand 0']
    %15 = vsyncpa [#allocation5], 0
    %s16 = scalar_lea.sflag [#allocation5], 1
    %17 = vsyncpa %s16, 0
    %18 = vsyncpa [#allocation6], 0
    %s19 = scalar_lea.sflag [#allocation6], 1
    %20 = vsyncpa %s19, 0
    loop: start=0, step=1, limit=4
    $region2: #{tpu_custom_call.1} parent=1 // loop_pre_header
      _
    $region3: #{tpu_custom_call.1} parent=1 // loop_header
      %s22 = sphi 0, %s26
      %p23 = scmp.ge.s32.totalorder %s22, 4
      %s29 = sphi 0, %s41
      %s30 = sphi 0, %s37
      %s31 = sphi 0, %s29
      %s32 = sphi 0, %s30
      %s33 = sphi 0, %s31
      %s34 = sphi 0, %s32
      %s46 = sphi 0, %s48
      %s49 = sphi 0, %s46
      %s50 = sphi 0, %s49
      %s66 = sphi 0, %s50
      %s74 = sphi 0, %s76
      %s77 = sphi 0, %s74
      %s78 = sphi 0, %s77
      %s94 = sphi 0, %s78
    $region4: #{tpu_custom_call.1} parent=1 // loop_header_branch
      %25 = sbr.rel (%p23) target = $region8
    $region5: #{tpu_custom_call.1} parent=1 // loop_body
      %s27 = ssub.s32 %s22, 1
      %s28 = ssub.s32 %s22, 2
      %s35 = sadd.s32 1, %s30
      %p36 = scmp.ge.s32.totalorder %s35, 1
      %s37 = scalar_select %p36, 0, %s35
      %s38 = sadd.s32 1, %s29
      %s39 = scalar_select %p36, %s38, %s29
      %p40 = scmp.ge.s32.totalorder %s39, 2
      %s41 = scalar_select %p40, 0, %s39
      %s42 = ssub.s32 %s29, %s41
      %s43 = ssub.s32 %s30, %s37
      %s44 = sor.u32 %s42, %s43
      %p45 = scmp.eq.s32.totalorder %s44, 0
      %s47 = sadd.s32 %s46, 1
      %s48 = scalar_select %p45, %s46, %s47
      %p51 = pneg %p45
      %p52 = scmp.eq.s32.totalorder %s22, 1
      %p53 = por %p51, %p52
      %p54 = scmp.ne.s32.totalorder %s46, %s49
      %p55 = scmp.eq.s32.totalorder %s22, 0
      %p56 = por %p54, %p55
      %p57 = scmp.ne.s32.totalorder %s46, %s49
      %p58 = scmp.eq.s32.totalorder %s27, 1
      %p59 = por %p57, %p58
      %p60 = scmp.ne.s32.totalorder %s49, %s50
      %p61 = scmp.eq.s32.totalorder %s27, 0
      %p62 = por %p60, %p61
      %p63 = scmp.ne.s32.totalorder %s49, %s50
      %p64 = scmp.eq.s32.totalorder %s28, 1
      %p65 = por %p63, %p64
      %p67 = scmp.ne.s32.totalorder %s50, %s66
      %p68 = scmp.eq.s32.totalorder %s28, 0
      %p69 = por %p67, %p68
      %s70 = ssub.s32 %s29, %s41
      %s71 = ssub.s32 %s30, %s37
      %s72 = sor.u32 %s70, %s71
      %p73 = scmp.eq.s32.totalorder %s72, 0
      %s75 = sadd.s32 %s74, 1
      %s76 = scalar_select %p73, %s74, %s75
      %p79 = pneg %p73
      %p80 = scmp.eq.s32.totalorder %s22, 1
      %p81 = por %p79, %p80
      %p82 = scmp.ne.s32.totalorder %s74, %s77
      %p83 = scmp.eq.s32.totalorder %s22, 0
      %p84 = por %p82, %p83
      %p85 = scmp.ne.s32.totalorder %s74, %s77
      %p86 = scmp.eq.s32.totalorder %s27, 1
      %p87 = por %p85, %p86
      %p88 = scmp.ne.s32.totalorder %s77, %s78
      %p89 = scmp.eq.s32.totalorder %s27, 0
      %p90 = por %p88, %p89
      %p91 = scmp.ne.s32.totalorder %s77, %s78
      %p92 = scmp.eq.s32.totalorder %s28, 1
      %p93 = por %p91, %p92
      %p95 = scmp.ne.s32.totalorder %s78, %s94
      %p96 = scmp.eq.s32.totalorder %s28, 0
      %p97 = por %p95, %p96
      %p98 = scmp.le.s32.totalorder 1, %s22
      %p99 = scmp.lt.s32.totalorder %s22, 3
      %p100 = pnand %p98, %p99
      %p101 = pneg %p100
      // Predicated region
      $region9: #{tpu_custom_call.1} parent=5 // pred_check
        _
      $region10: #{tpu_custom_call.1} parent=5 // pred_check_branch
        %103 = sbr.rel (%p100) target = $region12
      $region11: #{tpu_custom_call.1} parent=5 // pred_region
        %s104 = ssub.s32 %s22, 1
      $region12: #{tpu_custom_call.1} parent=5 // pred_fallthru
        _
      %p105 = scmp.lt.s32.totalorder %s22, 2
      // Predicated region
      $region13: #{tpu_custom_call.1} parent=5 // pred_check
        %p106 = pneg %p105
      $region14: #{tpu_custom_call.1} parent=5 // pred_check_branch
        %108 = sbr.rel (%p106) target = $region16
      $region15: #{tpu_custom_call.1} parent=5 // pred_region
        // Predicated region
        $region17: #{tpu_custom_call.1} parent=15 // pred_check
          %p109 = pneg %p56
        $region18: #{tpu_custom_call.1} parent=15 // pred_check_branch
          %111 = sbr.rel (%p109) target = $region20
        $region19: #{tpu_custom_call.1} parent=15 // pred_region
          %s112 = sand.u32 %s46, 1
          %s113 = scalar_lea.sflag [#allocation5], %s112
          %s114 = sand.u32 %s46, 1
          %s115 = smul.addr %s114, 6
          %s116 = scalar_lea.vmem [#allocation4], %s115
          %118 = vsyncadd %s113, 0
          %s119 = smul.addr %s29, 3
          %s120 = sadd.s32 %s30, %s119
          %s121 = smul.addr %s120, 2
          %s122 = scalar_lea.hbm %s1, %s121
          %s123 = sshll.u32 %s122, 4
          %s124 = int_to_ptr.hbm [resolvable:$true] %s123
          %s125 = sshll.u32 %s116, 4
          %s126 = int_to_ptr.vmem [resolvable:$true] %s125
          %131 = dma.hbm_to_vmem [thread:$0]  %s124, 96, %s126, %s113, 32, 32, 2
        $region20: #{tpu_custom_call.1} parent=15 // pred_fallthru
          _
      $region16: #{tpu_custom_call.1} parent=5 // pred_fallthru
        _
      %p132 = scmp.le.s32.totalorder 1, %s22
      %p133 = scmp.lt.s32.totalorder %s22, 3
      %p134 = pnand %p132, %p133
      %p135 = pneg %p134
      // Predicated region
      $region21: #{tpu_custom_call.1} parent=5 // pred_check
        _
      $region22: #{tpu_custom_call.1} parent=5 // pred_check_branch
        %137 = sbr.rel (%p134) target = $region24
      $region23: #{tpu_custom_call.1} parent=5 // pred_region
        %s138 = ssub.s32 %s22, 1
        %s139 = sand.u32 %s49, 1
        %s140 = scalar_lea.sflag [#allocation5], %s139
        %s141 = sand.u32 %s49, 1
        %s142 = smul.addr %s141, 6
        %s143 = scalar_lea.vmem [#allocation4], %s142
        // Predicated region
        $region25: #{tpu_custom_call.1} parent=23 // pred_check
          %p144 = pneg %p62
        $region26: #{tpu_custom_call.1} parent=23 // pred_check_branch
          %146 = sbr.rel (%p144) target = $region28
        $region27: #{tpu_custom_call.1} parent=23 // pred_region
          %148 = dma.done %s140, 96
        $region28: #{tpu_custom_call.1} parent=23 // pred_fallthru
          _
        %s149 = sand.u32 %s49, 1
        %s150 = scalar_lea.sflag [#allocation5], %s149
        %s151 = sand.u32 %s49, 1
        %s152 = smul.addr %s151, 6
        %s153 = scalar_lea.vmem [#allocation4], %s152
        %p154 = pneg %p62
        %p155 = pneg %p59
        %p156 = pneg %p90
        %p157 = pneg %p87
        %s158 = sand.u32 %s77, 1
        %s159 = scalar_lea.sflag [#allocation6], %s158
        %s160 = sand.u32 %s77, 1
        %s161 = smul.addr %s160, 6
        %s162 = scalar_lea.vmem [#allocation7], %s161
        %s163 = sld [smem:[#allocation3]]
        %s164 = sld [smem:[#allocation3 + $0x1]]
        %s165 = sld [smem:[#allocation3 + $0x2]]
        %s166 = sld [smem:[#allocation3 + $0x3]]
        %s167 = sld [smem:[#allocation3 + $0x4]]
        %s168 = sld [smem:[#allocation3 + $0x5]]
        %s169 = sld [smem:[#allocation3 + $0x6]]
        %s170 = sld [smem:[#allocation3 + $0x7]]
        %s171 = sld [smem:[#allocation3 + $0x8]]
        %s172 = sld [smem:[#allocation3 + $0x9]]
        %s173 = sld [smem:[#allocation3 + $0xa]]
        %s174 = sld [smem:[#allocation3 + $0xb]]
        %s175 = sld [smem:[#allocation3 + $0xc]]
        %s176 = sld [smem:[#allocation3 + $0xd]]
        %s177 = sld [smem:[#allocation3 + $0xe]]
        %s178 = sld [smem:[#allocation3 + $0xf]]
        %s179 = sld [smem:[#allocation3 + $0x10]]
        %s180 = sld [smem:[#allocation3 + $0x11]]
        %s181 = sld [smem:[#allocation3 + $0x12]]
        %s182 = sld [smem:[#allocation3 + $0x13]]
        %s183 = sld [smem:[#allocation3 + $0x14]]
        %s184 = sld [smem:[#allocation3 + $0x15]]
        %s185 = sld [smem:[#allocation3 + $0x16]]
        %s186 = sld [smem:[#allocation3 + $0x17]]
        %s187 = sld [smem:[#allocation3 + $0x18]]
        %s188 = sld [smem:[#allocation3 + $0x19]]
        %s189 = sld [smem:[#allocation3 + $0x1a]]
        %s190 = sld [smem:[#allocation3 + $0x1b]]
        %s191 = sld [smem:[#allocation3 + $0x1c]]
        %s192 = sld [smem:[#allocation3 + $0x1d]]
        %s193 = sld [smem:[#allocation3 + $0x1e]]
        %s194 = sld [smem:[#allocation3 + $0x1f]]
        %s195 = sld [smem:[#allocation3 + $0x20]]
        %s196 = sld [smem:[#allocation3 + $0x21]]
        %s197 = sld [smem:[#allocation3 + $0x22]]
        %s198 = sld [smem:[#allocation3 + $0x23]]
        %v199 = vld [vmem:[%s143] sm:$0x3]
        %s200 = scalar_lea.vmem %s143, 2 [#allocation4]
        %v201 = vld [vmem:[%s200] sm:$0x3]
        %s202 = scalar_lea.vmem %s143, 4 [#allocation4]
        %v203 = vld [vmem:[%s202] sm:$0x3]
        %v204 = vstv %s163
        %v205 = vmul.f32 %v204, %v199
        %v206 = vstv %s164
        %v207 = vmul.f32 %v206, %v201
        %v208 = vadd.f32 %v205, %v207
        %v209 = vstv %s165
        %v210 = vmul.f32 %v209, %v203
        %v211 = vadd.f32 %v208, %v210
        %v212 = vstv %s172
        %v213 = vadd.f32 %v211, %v212
        %v214 = vstv %s166
        %v215 = vmul.f32 %v214, %v199
        %v216 = vstv %s167
        %v217 = vmul.f32 %v216, %v201
        %v218 = vadd.f32 %v215, %v217
        %v219 = vstv %s168
        %v220 = vmul.f32 %v219, %v203
        %v221 = vadd.f32 %v218, %v220
        %v222 = vstv %s173
        %v223 = vadd.f32 %v221, %v222
        %v224 = vstv %s169
        %v225 = vmul.f32 %v224, %v199
        %v226 = vstv %s170
        %v227 = vmul.f32 %v226, %v201
        %v228 = vadd.f32 %v225, %v227
        %v229 = vstv %s171
        %v230 = vmul.f32 %v229, %v203
        %v231 = vadd.f32 %v228, %v230
        %v232 = vstv %s174
        %v233 = vadd.f32 %v231, %v232
        %v234 = vmax.f32 %v213, 0.0
        %v235 = vmin.f32 %v234, 6.0
        %v236 = vmax.f32 %v223, 0.0
        %v237 = vmin.f32 %v236, 6.0
        %v238 = vmax.f32 %v233, 0.0
        %v239 = vmin.f32 %v238, 6.0
        %v240 = vstv %s175
        %v241 = vmul.f32 %v240, %v235
        %v242 = vstv %s176
        %v243 = vmul.f32 %v242, %v237
        %v244 = vadd.f32 %v241, %v243
        %v245 = vstv %s177
        %v246 = vmul.f32 %v245, %v239
        %v247 = vadd.f32 %v244, %v246
        %v248 = vstv %s184
        %v249 = vadd.f32 %v247, %v248
        %v250 = vstv %s178
        %v251 = vmul.f32 %v250, %v235
        %v252 = vstv %s179
        %v253 = vmul.f32 %v252, %v237
        %v254 = vadd.f32 %v251, %v253
        %v255 = vstv %s180
        %v256 = vmul.f32 %v255, %v239
        %v257 = vadd.f32 %v254, %v256
        %v258 = vstv %s185
        %v259 = vadd.f32 %v257, %v258
        %v260 = vstv %s181
        %v261 = vmul.f32 %v260, %v235
        %v262 = vstv %s182
        %v263 = vmul.f32 %v262, %v237
        %v264 = vadd.f32 %v261, %v263
        %v265 = vstv %s183
        %v266 = vmul.f32 %v265, %v239
        %v267 = vadd.f32 %v264, %v266
        %v268 = vstv %s186
        %v269 = vadd.f32 %v267, %v268
        %v270 = vmax.f32 %v249, 0.0
        %v271 = vmin.f32 %v270, 6.0
        %v272 = vmax.f32 %v259, 0.0
        %v273 = vmin.f32 %v272, 6.0
        %v274 = vmax.f32 %v269, 0.0
        %v275 = vmin.f32 %v274, 6.0
        %v276 = vstv %s187
        %v277 = vmul.f32 %v276, %v271
        %v278 = vstv %s188
        %v279 = vmul.f32 %v278, %v273
        %v280 = vadd.f32 %v277, %v279
        %v281 = vstv %s189
        %v282 = vmul.f32 %v281, %v275
        %v283 = vadd.f32 %v280, %v282
        %v284 = vstv %s196
        %v285 = vadd.f32 %v283, %v284
        %v286 = vstv %s190
        %v287 = vmul.f32 %v286, %v271
        %v288 = vstv %s191
        %v289 = vmul.f32 %v288, %v273
        %v290 = vadd.f32 %v287, %v289
        %v291 = vstv %s192
        %v292 = vmul.f32 %v291, %v275
        %v293 = vadd.f32 %v290, %v292
        %v294 = vstv %s197
        %v295 = vadd.f32 %v293, %v294
        %v296 = vstv %s193
        %v297 = vmul.f32 %v296, %v271
        %v298 = vstv %s194
        %v299 = vmul.f32 %v298, %v273
        %v300 = vadd.f32 %v297, %v299
        %v301 = vstv %s195
        %v302 = vmul.f32 %v301, %v275
        %v303 = vadd.f32 %v300, %v302
        %v304 = vstv %s198
        %v305 = vadd.f32 %v303, %v304
        %v306 = vmax.f32 %v285, 0.0
        %v307 = vmax.f32 %v295, 0.0
        %v308 = vmax.f32 %v305, 0.0
        %309 = vst [vmem:[%s162] sm:$0x3] %v306
        %s310 = scalar_lea.vmem %s162, 2 [#allocation7]
        %311 = vst [vmem:[%s310] sm:$0x3] %v307
        %s312 = scalar_lea.vmem %s162, 4 [#allocation7]
        %313 = vst [vmem:[%s312] sm:$0x3] %v308
        %s314 = sand.u32 %s77, 1
        %s315 = scalar_lea.sflag [#allocation6], %s314
        %s316 = sand.u32 %s77, 1
        %s317 = smul.addr %s316, 6
        %s318 = scalar_lea.vmem [#allocation7], %s317
        // Predicated region
        $region29: #{tpu_custom_call.1} parent=23 // pred_check
          %p319 = pneg %p87
        $region30: #{tpu_custom_call.1} parent=23 // pred_check_branch
          %321 = sbr.rel (%p319) target = $region32
        $region31: #{tpu_custom_call.1} parent=23 // pred_region
          %323 = vsyncadd %s315, 0
          %s324 = smul.addr %s31, 3
          %s325 = sadd.s32 %s32, %s324
          %s326 = smul.addr %s325, 2
          %s327 = scalar_lea.hbm %s2, %s326
          %s328 = sshll.u32 %s318, 4
          %s329 = int_to_ptr.vmem [resolvable:$true] %s328
          %s330 = sshll.u32 %s327, 4
          %s331 = int_to_ptr.hbm [resolvable:$true] %s330
          %336 = dma.vmem_to_hbm [thread:$0]  %s329, 96, %s331, %s315, 32, 32, 2
        $region32: #{tpu_custom_call.1} parent=23 // pred_fallthru
          _
      $region24: #{tpu_custom_call.1} parent=5 // pred_fallthru
        _
      %p337 = scmp.le.s32.totalorder 2, %s22
      // Predicated region
      $region33: #{tpu_custom_call.1} parent=5 // pred_check
        %p338 = pneg %p337
      $region34: #{tpu_custom_call.1} parent=5 // pred_check_branch
        %340 = sbr.rel (%p338) target = $region36
      $region35: #{tpu_custom_call.1} parent=5 // pred_region
        %s341 = ssub.s32 %s22, 2
        // Predicated region
        $region37: #{tpu_custom_call.1} parent=35 // pred_check
          %p342 = pneg %p93
        $region38: #{tpu_custom_call.1} parent=35 // pred_check_branch
          %344 = sbr.rel (%p342) target = $region40
        $region39: #{tpu_custom_call.1} parent=35 // pred_region
          %s345 = sand.u32 %s78, 1
          %s346 = scalar_lea.sflag [#allocation6], %s345
          %s347 = sand.u32 %s78, 1
          %s348 = smul.addr %s347, 6
          %s349 = scalar_lea.vmem [#allocation7], %s348
          %351 = dma.done %s346, 96
        $region40: #{tpu_custom_call.1} parent=35 // pred_fallthru
          _
      $region36: #{tpu_custom_call.1} parent=5 // pred_fallthru
        _
    $region6: #{tpu_custom_call.1} parent=1 // loop_footer
      %s26 = sadd.s32 1, %s22
    $region7: #{tpu_custom_call.1} parent=1 // loop_footer_branch
      %21 = sbr.rel target = $region3
    $region8: #{tpu_custom_call.1} parent=1 // loop_exit
      _
    %352 = vsyncpa [#allocation5], 1
    %s353 = scalar_lea.sflag [#allocation5], 1
    %354 = vsyncpa %s353, 1
    %355 = vsyncpa [#allocation6], 1
    %s356 = scalar_lea.sflag [#allocation6], 1
    %357 = vsyncpa %s356, 1

</llo_original>
